<compile_context>
chip_gen: v5e
topology: v5e:2x2
jax: 0.10.0
libtpu: 0.0.40
codegen_flags: <defaults>
</compile_context>

<pallas_src>
import math

import jax
import jax.numpy as jnp
from jax.experimental import pallas as pl
from jax.experimental.pallas import tpu as pltpu


# ---------------------------------------------------------------------------
# PostFCTrans.forward: pure metadata reshape -> no Pallas kernel.
# ---------------------------------------------------------------------------
def post_fc_trans(x, channels):
    """(B, whole_channels) -> (B, channels, H, W); same row-major data."""
    b, whole = x.shape
    hw = whole // channels
    h = w = math.isqrt(hw)
    # TODO(synk): assumes square feature maps (matches the PyTorch module);
    # non-square maps would need (h, w) passed explicitly.
    assert channels * h * w == whole, "whole_channels must be channels * h * w"
    return x.reshape(b, channels, h, w)


# ---------------------------------------------------------------------------
# FCLayer (Linear + bias + ReLU) kernel: (M, N, K)-tiled matmul, f32 VMEM
# accumulator, bias + ReLU fused on the final K step.
# ---------------------------------------------------------------------------
def _fc_relu_kernel(x_ref, w_ref, b_ref, o_ref, acc_ref):
    k = pl.program_id(2)

    @pl.when(k == 0)
    def _init():
        acc_ref[...] = jnp.zeros_like(acc_ref)

    acc_ref[...] += jnp.dot(x_ref[...], w_ref[...],
                            preferred_element_type=jnp.float32)

    @pl.when(k == pl.num_programs(2) - 1)
    def _finalize():
        y = acc_ref[...] + b_ref[...].astype(jnp.float32)
        o_ref[...] = jnp.maximum(y, 0.0).astype(o_ref.dtype)


def _vmem_limit_bytes():
    """Per-generation scoped-VMEM limit: 3/4 of physical capacity."""
    cap = 64 << 20  # conservative fallback (v7x per-TC physical VMEM)
    try:
        info = pltpu.get_tpu_info()
        cap = int(getattr(info, "vmem_capacity_bytes", cap) or cap)
    except Exception:
        pass
    return (cap * 3) // 4


def _choose_tiles(B, K, N, w_itemsize, vmem_limit):
    """Lane-dense tiles sized against the per-generation VMEM limit."""
    # K tile: full K when small; otherwise a 128-multiple divisor of K.
    if K <= 2048 or K % 128 != 0:
        tk = K
    else:
        tk = 2048
        while K % tk != 0:
            tk -= 128

    # N tile: largest lane-dense tile that (a) keeps the double-buffered
    # weight slab within ~half the VMEM limit, (b) leaves >= 2 (ideally 4)
    # N steps so both v7x TensorCores stream weights and the pipeline
    # overlaps, (c) prefers >= 512 lanes so strided weight-DMA rows stay long.
    if N % 128 != 0:
        tn = N
    else:
        w_budget = vmem_limit // 4  # per weight buffer (x2 for double-buffer)
        tn = max(128, min(N, (w_budget // max(1, tk * w_itemsize)) // 128 * 128))
        if N >= 4 * 512:
            cap = (N // 4) // 128 * 128          # >= 4 steps, tiles stay >= 512
        elif N >= 2 * 128:
            cap = max(128, (N // 2) // 128 * 128)  # always >= 2 steps
        else:
            cap = N
        tn = min(tn, cap)
        while N % tn != 0:
            tn -= 128

    # M tile: full batch when small; otherwise a sublane-aligned divisor.
    if B <= 256 or B % 8 != 0:
        tm = B
    else:
        tm = 256
        while B % tm != 0:
            tm -= 8
    return tm, tk, tn


def fc_post_fc_trans(x, w, b, channels, *, stream_dtype=jnp.bfloat16):
    """FCLayer forward (relu(x @ w + b)) fused with PostFCTrans (NCHW view)."""
    B, K = x.shape
    K2, N = w.shape
    assert K == K2
    out_dtype = x.dtype

    # bf16 streaming of the bandwidth-dominant operands; f32 MXU accumulate.
    xs = x.astype(stream_dtype)
    ws = w.astype(stream_dtype)
    b2d = b.reshape(1, N).astype(jnp.float32)

    vmem_limit = _vmem_limit_bytes()
    itemsize = jnp.dtype(stream_dtype).itemsize
    tm, tk, tn = _choose_tiles(B, K, N, itemsize, vmem_limit)
    grid = (B // tm, N // tn, K // tk)

    cost = pl.CostEstimate(
        flops=2 * B * K * N,
        transcendentals=0,
        bytes_accessed=(K * N * itemsize
                        + B * K * itemsize
                        + B * N * jnp.dtype(out_dtype).itemsize
                        + N * 4),
    )

    flat = pl.pallas_call(
        _fc_relu_kernel,
        out_shape=jax.ShapeDtypeStruct((B, N), out_dtype),
        grid_spec=pltpu.PrefetchScalarGridSpec(
            num_scalar_prefetch=0,
            grid=grid,
            in_specs=[
                # Activations: (tm, tk) tile along batch / reduction.
                pl.BlockSpec((tm, tk), lambda i, j, k: (i, k)),
                # Weights: lane-dense (tk, tn) tile (bf16 streamed).
                pl.BlockSpec((tk, tn), lambda i, j, k: (k, j)),
                # Bias: (1, tn) tile along N.
                pl.BlockSpec((1, tn), lambda i, j, k: (0, j)),
            ],
            # Lane-dense flat output tile; the NCHW reshape below is metadata.
            out_specs=pl.BlockSpec((tm, tn), lambda i, j, k: (i, j)),
            scratch_shapes=[pltpu.VMEM((tm, tn), jnp.float32)],
        ),
        compiler_params=pltpu.CompilerParams(
            dimension_semantics=("parallel", "parallel", "arbitrary"),
            vmem_limit_bytes=vmem_limit,
        ),
        cost_estimate=cost,
    )(xs, ws, b2d)

    # PostFCTrans fused in as a zero-cost view of the flat FC output.
    return post_fc_trans(flat, channels)


if __name__ == "__main__":
    # Tail of the classifier: Flatten -> FC(K -> C*H*W) + ReLU -> PostFCTrans.
    B, C, H, W = 2, 4, 16, 16
    N = C * H * W          # whole_channels = 1024
    K = 512                # flattened feature size feeding the FC layer

    key = jax.random.PRNGKey(0)
    kx, kw, kb = jax.random.split(key, 3)
    x = jax.random.normal(kx, (B, K), dtype=jnp.float32)
    w = jax.random.normal(kw, (K, N), dtype=jnp.float32) / (K ** 0.5)
    bias = jax.random.normal(kb, (N,), dtype=jnp.float32)

    out = fc_post_fc_trans(x, w, bias, channels=C)
    out = jax.block_until_ready(out)
    assert out.shape == (B, C, H, W)

    # Reference for exactly the computation the kernel performs: bf16-streamed
    # operands, f32 accumulation (bf16 products are exact in f32).
    xr = x.astype(jnp.bfloat16).astype(jnp.float32)
    wr = w.astype(jnp.bfloat16).astype(jnp.float32)
    ref = post_fc_trans(
        jnp.maximum(jnp.dot(xr, wr, precision=jax.lax.Precision.HIGHEST) + bias, 0.0),
        channels=C,
    )
    assert jnp.allclose(out, ref, rtol=1e-2, atol=1e-2), float(
        jnp.max(jnp.abs(out - ref))
    )

    # Sanity vs the full-precision FCLayer forward (bf16 streaming error only).
    ref_full = post_fc_trans(
        jnp.maximum(jnp.dot(x, w, precision=jax.lax.Precision.HIGHEST) + bias, 0.0),
        channels=C,
    )
    assert jnp.allclose(out, ref_full, rtol=5e-2, atol=5e-2), float(
        jnp.max(jnp.abs(out - ref_full))
    )

    print("KERNEL_OK")
</pallas_src>

<mosaic_0001>
module attributes {stable_mosaic.version = 11 : i64} {
  func.func @_fc_relu_kernel(%arg0: i32, %arg1: i32, %arg2: i32, %arg3: memref<2x512xbf16, #tpu.memory_space<vmem>>, %arg4: memref<512x512xbf16, #tpu.memory_space<vmem>>, %arg5: memref<1x512xf32, #tpu.memory_space<vmem>>, %arg6: memref<2x512xf32, #tpu.memory_space<vmem>>, %arg7: memref<2x512xf32, #tpu.memory_space<vmem>>) attributes {dimension_semantics = [#tpu.dimension_semantics<parallel>, #tpu.dimension_semantics<parallel>, #tpu.dimension_semantics<arbitrary>], iteration_bounds = array<i64: 1, 2, 1>, scalar_prefetch = 0 : i64, scratch_operands = 1 : i64, tpu.core_type = #tpu.core_type<tc>, window_params = [{transform_indices = @transform_0, window_bounds = array<i64: 2, 512>}, {transform_indices = @transform_1, window_bounds = array<i64: 512, 512>}, {transform_indices = @transform_2, window_bounds = array<i64: 1, 512>}, {transform_indices = @transform_3, window_bounds = array<i64: 2, 512>}]} {
    %c0_i32 = arith.constant 0 : i32
    %0 = arith.cmpi eq, %arg2, %c0_i32 : i32
    %1 = arith.extui %0 : i1 to i32
    %c0_i32_0 = arith.constant 0 : i32
    %2 = arith.cmpi ne, %1, %c0_i32_0 : i32
    scf.if %2 {
      %cst_10 = arith.constant 0.000000e+00 : f32
      %12 = vector.broadcast %cst_10 : f32 to vector<2x512xf32>
      %c0_11 = arith.constant 0 : index
      %c0_12 = arith.constant 0 : index
      %13 = vector.load %arg7[%c0_11, %c0_12] : memref<2x512xf32, #tpu.memory_space<vmem>>, vector<2x512xf32>
      tpu.vector_store %arg7[%c0_11, %c0_12], %12 {strides = array<i32>} : memref<2x512xf32, #tpu.memory_space<vmem>>, vector<2x512xf32>,
    } else {
    }
    %c0 = arith.constant 0 : index
    %c0_1 = arith.constant 0 : index
    %3 = vector.load %arg7[%c0, %c0_1] : memref<2x512xf32, #tpu.memory_space<vmem>>, vector<2x512xf32>
    %c0_2 = arith.constant 0 : index
    %c0_3 = arith.constant 0 : index
    %4 = vector.load %arg3[%c0_2, %c0_3] : memref<2x512xbf16, #tpu.memory_space<vmem>>, vector<2x512xbf16>
    %c0_4 = arith.constant 0 : index
    %c0_5 = arith.constant 0 : index
    %5 = vector.load %arg4[%c0_4, %c0_5] : memref<512x512xbf16, #tpu.memory_space<vmem>>, vector<512x512xbf16>
    %cst = arith.constant dense<0.000000e+00> : vector<2x512xf32>
    %6 = tpu.matmul %4, %5, %cst {dimension_numbers = #tpu.dot_dimension_numbers<[1], [0], [0], [1], [0, 0, 1, 1], [], []>} : vector<2x512xbf16>, vector<512x512xbf16>, vector<2x512xf32> -> vector<2x512xf32>
    %7 = arith.addf %3, %6 : vector<2x512xf32>
    %c0_6 = arith.constant 0 : index
    %c0_7 = arith.constant 0 : index
    %8 = vector.load %arg7[%c0_6, %c0_7] : memref<2x512xf32, #tpu.memory_space<vmem>>, vector<2x512xf32>
    tpu.vector_store %arg7[%c0_6, %c0_7], %7 {strides = array<i32>} : memref<2x512xf32, #tpu.memory_space<vmem>>, vector<2x512xf32>,
    %c0_i32_8 = arith.constant 0 : i32
    %9 = arith.cmpi eq, %arg2, %c0_i32_8 : i32
    %10 = arith.extui %9 : i1 to i32
    %c0_i32_9 = arith.constant 0 : i32
    %11 = arith.cmpi ne, %10, %c0_i32_9 : i32
    scf.if %11 {
      %c0_10 = arith.constant 0 : index
      %c0_11 = arith.constant 0 : index
      %12 = vector.load %arg7[%c0_10, %c0_11] : memref<2x512xf32, #tpu.memory_space<vmem>>, vector<2x512xf32>
      %c0_12 = arith.constant 0 : index
      %c0_13 = arith.constant 0 : index
      %13 = vector.load %arg5[%c0_12, %c0_13] : memref<1x512xf32, #tpu.memory_space<vmem>>, vector<1x512xf32>
      %14 = vector.broadcast %13 : vector<1x512xf32> to vector<2x512xf32>
      %15 = arith.addf %12, %14 : vector<2x512xf32>
      %cst_14 = arith.constant 0.000000e+00 : f32
      %16 = vector.broadcast %cst_14 : f32 to vector<2x512xf32>
      %17 = arith.maximumf %15, %16 : vector<2x512xf32>
      %c0_15 = arith.constant 0 : index
      %c0_16 = arith.constant 0 : index
      %18 = vector.load %arg6[%c0_15, %c0_16] : memref<2x512xf32, #tpu.memory_space<vmem>>, vector<2x512xf32>
      tpu.vector_store %arg6[%c0_15, %c0_16], %17 {strides = array<i32>} : memref<2x512xf32, #tpu.memory_space<vmem>>, vector<2x512xf32>,
    } else {
    }
    return
  }
  func.func @transform_0(%arg0: i32, %arg1: i32, %arg2: i32) -> (i32, i32) {
    %c0_i32 = arith.constant 0 : i32
    return %arg0, %arg2 : i32, i32
  }
  func.func @transform_1(%arg0: i32, %arg1: i32, %arg2: i32) -> (i32, i32) {
    %c0_i32 = arith.constant 0 : i32
    return %arg2, %arg1 : i32, i32
  }
  func.func @transform_2(%arg0: i32, %arg1: i32, %arg2: i32) -> (i32, i32) {
    %c0_i32 = arith.constant 0 : i32
    %c0_i32_0 = arith.constant 0 : i32
    return %c0_i32, %arg1 : i32, i32
  }
  func.func @transform_3(%arg0: i32, %arg1: i32, %arg2: i32) -> (i32, i32) {
    %c0_i32 = arith.constant 0 : i32
    return %arg0, %arg1 : i32, i32
  }
}

</mosaic_0001>

<llo_original>
// kernel: tpu_custom_call.1
$region0: #{tpu_custom_call.1}
  #allocation0 [shape = 'u32[]', space=smem, size = 0x4, offset = 0x4, fixed_abs, tag = 'smem constant byte address 0x4 - core index']
  #allocation1 [shape = 'u32[72,128]{1,0:T(1,128)}', space=vmem, size = 0x9000, scoped, tag = 'internal scratch']
  #allocation2 [shape = 'f32[2,512]{1,0:T(2,128)}', space=vmem, size = 0x1000, scoped, tag = 'scratch operand']
  %s0 = inlined_call_operand.hbm [shape: bf16[2,512], index: 0, kind: input, shape index: {}]
  %s1 = inlined_call_operand.hbm [shape: bf16[512,1024], index: 1, kind: input, shape index: {}]
  %s2 = inlined_call_operand.hbm [shape: f32[1,1024], index: 2, kind: input, shape index: {}]
  %s3 = inlined_call_operand.hbm [shape: f32[2,1024], index: 3, kind: output, shape index: {}]
  %s4 = sld [smem:[#allocation0]]
  $region65: #{tpu_custom_call.1} parent=0
    _
  %s6 = ssub.s32 1, %s4
  %s7 = scalar_select 0, %s6, %s4
  $region1: #{tpu_custom_call.1} parent=0
    #allocation3 [shape = 'u8[2048]{0}', space=vmem, size = 0x800, scoped, tag = 'input window, operand 0, single buffered']
    #allocation4 [shape = 's32[2]{0}', space=sflag, size = 0x8, scoped, tag = 'scoped memory for tpu_custom_call.1']
    #allocation5 [shape = 's32[2]{0}', space=sflag, size = 0x8, scoped, tag = 'scoped memory for tpu_custom_call.1']
    #allocation6 [shape = 'u8[1048576]{0}', space=vmem, size = 0x100000, scoped, tag = 'input window, operand 1']
    #allocation7 [shape = 's32[2]{0}', space=sflag, size = 0x8, scoped, tag = 'scoped memory for tpu_custom_call.1']
    #allocation8 [shape = 'u8[4096]{0}', space=vmem, size = 0x1000, scoped, tag = 'input window, operand 2']
    #allocation9 [shape = 'u8[8192]{0}', space=vmem, size = 0x2000, scoped, tag = 'output window, operand 0']
    %8 = vsyncpa [#allocation4], 0
    %9 = vsyncpa [#allocation7], 0
    %s10 = scalar_lea.sflag [#allocation7], 1
    %11 = vsyncpa %s10, 0
    %12 = vsyncpa [#allocation5], 0
    %s13 = scalar_lea.sflag [#allocation5], 1
    %14 = vsyncpa %s13, 0
    loop: start=0, step=1, limit=4
    $region2: #{tpu_custom_call.1} parent=1 // loop_pre_header
      _
    $region3: #{tpu_custom_call.1} parent=1 // loop_header
      %s16 = sphi 0, %s20
      %p17 = scmp.ge.s32.totalorder %s16, 4
      %s23 = sphi 0, %s42
      %s24 = sphi 0, %s38
      %s25 = sphi 0, %s34
      %s26 = sphi 0, %s23
      %s27 = sphi 0, %s24
      %s28 = sphi 0, %s25
      %s29 = sphi 0, %s26
      %s30 = sphi 0, %s27
      %s31 = sphi 0, %s28
      %s47 = sphi 0, %s49
      %s50 = sphi 0, %s47
      %s51 = sphi 0, %s50
      %s67 = sphi 0, %s51
      %s75 = sphi 0, %s77
      %s78 = sphi 0, %s75
      %s79 = sphi 0, %s78
      %s95 = sphi 0, %s79
      %s101 = sphi 0, %s103
      %s104 = sphi 0, %s101
      %s105 = sphi 0, %s104
      %s121 = sphi 0, %s105
      %s129 = sphi 0, %s131
      %s132 = sphi 0, %s129
      %s133 = sphi 0, %s132
      %s149 = sphi 0, %s133
    $region4: #{tpu_custom_call.1} parent=1 // loop_header_branch
      %19 = sbr.rel (%p17) target = $region8
    $region5: #{tpu_custom_call.1} parent=1 // loop_body
      %s21 = ssub.s32 %s16, 1
      %s22 = ssub.s32 %s16, 2
      %s32 = sadd.s32 1, %s25
      %p33 = scmp.ge.s32.totalorder %s32, 1
      %s34 = scalar_select %p33, 0, %s32
      %s35 = sadd.s32 1, %s24
      %s36 = scalar_select %p33, %s35, %s24
      %p37 = scmp.ge.s32.totalorder %s36, 2
      %s38 = scalar_select %p37, 0, %s36
      %s39 = sadd.s32 1, %s23
      %s40 = scalar_select %p37, %s39, %s23
      %p41 = scmp.ge.s32.totalorder %s40, 1
      %s42 = scalar_select %p41, 0, %s40
      %s43 = ssub.s32 %s23, %s42
      %s44 = ssub.s32 %s25, %s34
      %s45 = sor.u32 %s43, %s44
      %p46 = scmp.eq.s32.totalorder %s45, 0
      %s48 = sadd.s32 %s47, 1
      %s49 = scalar_select %p46, %s47, %s48
      %p52 = pneg %p46
      %p53 = scmp.eq.s32.totalorder %s16, 1
      %p54 = por %p52, %p53
      %p55 = scmp.ne.s32.totalorder %s47, %s50
      %p56 = scmp.eq.s32.totalorder %s16, 0
      %p57 = por %p55, %p56
      %p58 = scmp.ne.s32.totalorder %s47, %s50
      %p59 = scmp.eq.s32.totalorder %s21, 1
      %p60 = por %p58, %p59
      %p61 = scmp.ne.s32.totalorder %s50, %s51
      %p62 = scmp.eq.s32.totalorder %s21, 0
      %p63 = por %p61, %p62
      %p64 = scmp.ne.s32.totalorder %s50, %s51
      %p65 = scmp.eq.s32.totalorder %s22, 1
      %p66 = por %p64, %p65
      %p68 = scmp.ne.s32.totalorder %s51, %s67
      %p69 = scmp.eq.s32.totalorder %s22, 0
      %p70 = por %p68, %p69
      %s71 = ssub.s32 %s25, %s34
      %s72 = ssub.s32 %s24, %s38
      %s73 = sor.u32 %s71, %s72
      %p74 = scmp.eq.s32.totalorder %s73, 0
      %s76 = sadd.s32 %s75, 1
      %s77 = scalar_select %p74, %s75, %s76
      %p80 = pneg %p74
      %p81 = scmp.eq.s32.totalorder %s16, 1
      %p82 = por %p80, %p81
      %p83 = scmp.ne.s32.totalorder %s75, %s78
      %p84 = scmp.eq.s32.totalorder %s16, 0
      %p85 = por %p83, %p84
      %p86 = scmp.ne.s32.totalorder %s75, %s78
      %p87 = scmp.eq.s32.totalorder %s21, 1
      %p88 = por %p86, %p87
      %p89 = scmp.ne.s32.totalorder %s78, %s79
      %p90 = scmp.eq.s32.totalorder %s21, 0
      %p91 = por %p89, %p90
      %p92 = scmp.ne.s32.totalorder %s78, %s79
      %p93 = scmp.eq.s32.totalorder %s22, 1
      %p94 = por %p92, %p93
      %p96 = scmp.ne.s32.totalorder %s79, %s95
      %p97 = scmp.eq.s32.totalorder %s22, 0
      %p98 = por %p96, %p97
      %s99 = ssub.s32 %s24, %s38
      %p100 = scmp.eq.s32.totalorder %s99, 0
      %s102 = sadd.s32 %s101, 1
      %s103 = scalar_select %p100, %s101, %s102
      %p106 = pneg %p100
      %p107 = scmp.eq.s32.totalorder %s16, 1
      %p108 = por %p106, %p107
      %p109 = scmp.ne.s32.totalorder %s101, %s104
      %p110 = scmp.eq.s32.totalorder %s16, 0
      %p111 = por %p109, %p110
      %p112 = scmp.ne.s32.totalorder %s101, %s104
      %p113 = scmp.eq.s32.totalorder %s21, 1
      %p114 = por %p112, %p113
      %p115 = scmp.ne.s32.totalorder %s104, %s105
      %p116 = scmp.eq.s32.totalorder %s21, 0
      %p117 = por %p115, %p116
      %p118 = scmp.ne.s32.totalorder %s104, %s105
      %p119 = scmp.eq.s32.totalorder %s22, 1
      %p120 = por %p118, %p119
      %p122 = scmp.ne.s32.totalorder %s105, %s121
      %p123 = scmp.eq.s32.totalorder %s22, 0
      %p124 = por %p122, %p123
      %s125 = ssub.s32 %s23, %s42
      %s126 = ssub.s32 %s24, %s38
      %s127 = sor.u32 %s125, %s126
      %p128 = scmp.eq.s32.totalorder %s127, 0
      %s130 = sadd.s32 %s129, 1
      %s131 = scalar_select %p128, %s129, %s130
      %p134 = pneg %p128
      %p135 = scmp.eq.s32.totalorder %s16, 1
      %p136 = por %p134, %p135
      %p137 = scmp.ne.s32.totalorder %s129, %s132
      %p138 = scmp.eq.s32.totalorder %s16, 0
      %p139 = por %p137, %p138
      %p140 = scmp.ne.s32.totalorder %s129, %s132
      %p141 = scmp.eq.s32.totalorder %s21, 1
      %p142 = por %p140, %p141
      %p143 = scmp.ne.s32.totalorder %s132, %s133
      %p144 = scmp.eq.s32.totalorder %s21, 0
      %p145 = por %p143, %p144
      %p146 = scmp.ne.s32.totalorder %s132, %s133
      %p147 = scmp.eq.s32.totalorder %s22, 1
      %p148 = por %p146, %p147
      %p150 = scmp.ne.s32.totalorder %s133, %s149
      %p151 = scmp.eq.s32.totalorder %s22, 0
      %p152 = por %p150, %p151
      %p153 = scmp.le.s32.totalorder 1, %s16
      %p154 = scmp.lt.s32.totalorder %s16, 3
      %p155 = pnand %p153, %p154
      %p156 = pneg %p155
      // Predicated region
      $region9: #{tpu_custom_call.1} parent=5 // pred_check
        _
      $region10: #{tpu_custom_call.1} parent=5 // pred_check_branch
        %158 = sbr.rel (%p155) target = $region12
      $region11: #{tpu_custom_call.1} parent=5 // pred_region
        %s159 = ssub.s32 %s16, 1
        // Predicated region
        $region13: #{tpu_custom_call.1} parent=11 // pred_check
          %p160 = pneg %p63
        $region14: #{tpu_custom_call.1} parent=11 // pred_check_branch
          %162 = sbr.rel (%p160) target = $region16
        $region15: #{tpu_custom_call.1} parent=11 // pred_region
          %s163 = smul.u32 4, %s28
          %165 = vsyncadd [#allocation4], 0
          %s166 = smul.addr %s26, 4
          %s167 = sadd.s32 %s163, %s166
          %s168 = scalar_lea.hbm %s0, %s167
          %s170 = sshll.u32 %s168, 4
          %s171 = int_to_ptr.hbm [resolvable:$true] %s170
          %s172 = sshll.u32 [#allocation3], 4
          %s173 = int_to_ptr.vmem [resolvable:$true] %s172
          %175 = dma.hbm_to_vmem [thread:$0]  %s171, 64, %s173, [#allocation4]
        $region16: #{tpu_custom_call.1} parent=11 // pred_fallthru
          _
      $region12: #{tpu_custom_call.1} parent=5 // pred_fallthru
        _
      %p176 = scmp.lt.s32.totalorder %s16, 2
      // Predicated region
      $region17: #{tpu_custom_call.1} parent=5 // pred_check
        %p177 = pneg %p176
      $region18: #{tpu_custom_call.1} parent=5 // pred_check_branch
        %179 = sbr.rel (%p177) target = $region20
      $region19: #{tpu_custom_call.1} parent=5 // pred_region
        // Predicated region
        $region21: #{tpu_custom_call.1} parent=19 // pred_check
          %p180 = pneg %p85
        $region22: #{tpu_custom_call.1} parent=19 // pred_check_branch
          %182 = sbr.rel (%p180) target = $region24
        $region23: #{tpu_custom_call.1} parent=19 // pred_region
          %s183 = sand.u32 %s16, 1
          %s184 = scalar_lea.sflag [#allocation7], %s183
          %s185 = sand.u32 %s75, 1
          %s186 = smul.addr %s185, 1024
          %s187 = scalar_lea.vmem [#allocation6], %s186
          %s188 = smul.u32 64, %s25
          %s189 = smul.u32 4, %s24
          %191 = vsyncadd %s184, 0
          %s192 = smul.addr %s188, 8
          %s193 = sadd.s32 %s189, %s192
          %s194 = smul.addr %s193, 4
          %s195 = scalar_lea.hbm %s1, %s194
          %s196 = sshll.u32 %s195, 4
          %s197 = int_to_ptr.hbm [resolvable:$true] %s196
          %s198 = sshll.u32 %s187, 4
          %s199 = int_to_ptr.vmem [resolvable:$true] %s198
          %204 = dma.hbm_to_vmem [thread:$0]  %s197, 16384, %s199, %s184, 512, 256, 16
        $region24: #{tpu_custom_call.1} parent=19 // pred_fallthru
          _
        // Predicated region
        $region25: #{tpu_custom_call.1} parent=19 // pred_check
          %p205 = pneg %p111
        $region26: #{tpu_custom_call.1} parent=19 // pred_check_branch
          %207 = sbr.rel (%p205) target = $region28
        $region27: #{tpu_custom_call.1} parent=19 // pred_region
          %s208 = sand.u32 %s16, 1
          %s209 = scalar_lea.sflag [#allocation7], %s208
          %s210 = sand.u32 %s101, 1
          %s211 = smul.addr %s210, 4
          %s212 = scalar_lea.vmem [#allocation8], %s211
          %s213 = smul.u32 4, %s24
          %215 = vsyncadd %s209, 0
          %s216 = scalar_lea.hbm %s2, %s213
          %s218 = sshll.u32 %s216, 4
          %s219 = int_to_ptr.hbm [resolvable:$true] %s218
          %s220 = sshll.u32 %s212, 4
          %s221 = int_to_ptr.vmem [resolvable:$true] %s220
          %223 = dma.hbm_to_vmem [thread:$0]  %s219, 64, %s221, %s209
        $region28: #{tpu_custom_call.1} parent=19 // pred_fallthru
          _
      $region20: #{tpu_custom_call.1} parent=5 // pred_fallthru
        _
      %p224 = scmp.le.s32.totalorder 1, %s16
      %p225 = scmp.lt.s32.totalorder %s16, 3
      %p226 = pnand %p224, %p225
      %p227 = pneg %p226
      // Predicated region
      $region29: #{tpu_custom_call.1} parent=5 // pred_check
        _
      $region30: #{tpu_custom_call.1} parent=5 // pred_check_branch
        %229 = sbr.rel (%p226) target = $region32
      $region31: #{tpu_custom_call.1} parent=5 // pred_region
        %s230 = ssub.s32 %s16, 1
        // Predicated region
        $region33: #{tpu_custom_call.1} parent=31 // pred_check
          %p231 = pneg %p63
        $region34: #{tpu_custom_call.1} parent=31 // pred_check_branch
          %233 = sbr.rel (%p231) target = $region36
        $region35: #{tpu_custom_call.1} parent=31 // pred_region
          %235 = dma.done [#allocation4], 64
        $region36: #{tpu_custom_call.1} parent=31 // pred_fallthru
          _
        %s236 = sand.u32 %s21, 1
        %s237 = scalar_lea.sflag [#allocation7], %s236
        %s238 = sand.u32 %s78, 1
        %s239 = smul.addr %s238, 1024
        %s240 = scalar_lea.vmem [#allocation6], %s239
        // Predicated region
        $region37: #{tpu_custom_call.1} parent=31 // pred_check
          %p241 = pneg %p91
        $region38: #{tpu_custom_call.1} parent=31 // pred_check_branch
          %243 = sbr.rel (%p241) target = $region40
        $region39: #{tpu_custom_call.1} parent=31 // pred_region
          %245 = dma.done %s237, 16384
        $region40: #{tpu_custom_call.1} parent=31 // pred_fallthru
          _
        %s246 = sand.u32 %s21, 1
        %s247 = scalar_lea.sflag [#allocation7], %s246
        %s248 = sand.u32 %s104, 1
        %s249 = smul.addr %s248, 4
        %s250 = scalar_lea.vmem [#allocation8], %s249
        // Predicated region
        $region41: #{tpu_custom_call.1} parent=31 // pred_check
          %p251 = pneg %p117
        $region42: #{tpu_custom_call.1} parent=31 // pred_check_branch
          %253 = sbr.rel (%p251) target = $region44
        $region43: #{tpu_custom_call.1} parent=31 // pred_region
          %255 = dma.done %s247, 64
        $region44: #{tpu_custom_call.1} parent=31 // pred_fallthru
          _
        %p256 = pneg %p63
        %p257 = pneg %p60
        %s258 = sand.u32 %s21, 1
        %s259 = scalar_lea.sflag [#allocation7], %s258
        %s260 = sand.u32 %s78, 1
        %s261 = smul.addr %s260, 1024
        %s262 = scalar_lea.vmem [#allocation6], %s261
        %p263 = pneg %p91
        %p264 = pneg %p88
        %s265 = sand.u32 %s21, 1
        %s266 = scalar_lea.sflag [#allocation7], %s265
        %s267 = sand.u32 %s104, 1
        %s268 = smul.addr %s267, 4
        %s269 = scalar_lea.vmem [#allocation8], %s268
        %p270 = pneg %p117
        %p271 = pneg %p114
        %p272 = pneg %p145
        %p273 = pneg %p142
        %s274 = sand.u32 %s132, 1
        %s275 = scalar_lea.sflag [#allocation5], %s274
        %s276 = sand.u32 %s132, 1
        %s277 = smul.addr %s276, 8
        %s278 = scalar_lea.vmem [#allocation9], %s277
        %s279 = smul.u32 4, %s28
        %s280 = smul.u32 64, %s28
        %s281 = smul.u32 4, %s27
        %s282 = smul.u32 4, %s27
        %s283 = smul.u32 4, %s27
        %p284 = scmp.eq.s32.totalorder %s28, 0
        // Predicated region
        $region45: #{tpu_custom_call.1} parent=31 // pred_check
          %p285 = pneg %p284
        $region46: #{tpu_custom_call.1} parent=31 // pred_check_branch
          %287 = sbr.rel (%p285) target = $region48
        $region47: #{tpu_custom_call.1} parent=31 // pred_region
          %288 = vst [vmem:[#allocation2] sm:$0xff] 0.0
        $region48: #{tpu_custom_call.1} parent=31 // pred_fallthru
          _
        %v289 = vld [vmem:[#allocation2] sm:$0xff]
        %v290 = vld [vmem:[#allocation3] sm:$0xf]
        %v291 = vld [vmem:[%s240] sm:$0xff]
        %v292 = vld [vmem:[%s240 + $0x8] sm:$0xff]
        %v293 = vld [vmem:[%s240 + $0x10] sm:$0xff]
        %v294 = vld [vmem:[%s240 + $0x18] sm:$0xff]
        %v295 = vld [vmem:[%s240 + $0x20] sm:$0xff]
        %v296 = vld [vmem:[%s240 + $0x28] sm:$0xff]
        %v297 = vld [vmem:[%s240 + $0x30] sm:$0xff]
        %v298 = vld [vmem:[%s240 + $0x38] sm:$0xff]
        %v299 = vld [vmem:[%s240 + $0x40] sm:$0xff]
        %v300 = vld [vmem:[%s240 + $0x48] sm:$0xff]
        %v301 = vld [vmem:[%s240 + $0x50] sm:$0xff]
        %v302 = vld [vmem:[%s240 + $0x58] sm:$0xff]
        %v303 = vld [vmem:[%s240 + $0x60] sm:$0xff]
        %v304 = vld [vmem:[%s240 + $0x68] sm:$0xff]
        %v305 = vld [vmem:[%s240 + $0x70] sm:$0xff]
        %v306 = vld [vmem:[%s240 + $0x78] sm:$0xff]
        %v307 = vld [vmem:[%s240 + $0x80] sm:$0xff]
        %v308 = vld [vmem:[%s240 + $0x88] sm:$0xff]
        %v309 = vld [vmem:[%s240 + $0x90] sm:$0xff]
        %v310 = vld [vmem:[%s240 + $0x98] sm:$0xff]
        %v311 = vld [vmem:[%s240 + $0xa0] sm:$0xff]
        %v312 = vld [vmem:[%s240 + $0xa8] sm:$0xff]
        %v313 = vld [vmem:[%s240 + $0xb0] sm:$0xff]
        %v314 = vld [vmem:[%s240 + $0xb8] sm:$0xff]
        %v315 = vld [vmem:[%s240 + $0xc0] sm:$0xff]
        %v316 = vld [vmem:[%s240 + $0xc8] sm:$0xff]
        %v317 = vld [vmem:[%s240 + $0xd0] sm:$0xff]
        %v318 = vld [vmem:[%s240 + $0xd8] sm:$0xff]
        %v319 = vld [vmem:[%s240 + $0xe0] sm:$0xff]
        %v320 = vld [vmem:[%s240 + $0xe8] sm:$0xff]
        %v321 = vld [vmem:[%s240 + $0xf0] sm:$0xff]
        %v322 = vld [vmem:[%s240 + $0xf8] sm:$0xff]
        %v323 = vld [vmem:[%s240 + $0x100] sm:$0xff]
        %v324 = vld [vmem:[%s240 + $0x108] sm:$0xff]
        %v325 = vld [vmem:[%s240 + $0x110] sm:$0xff]
        %v326 = vld [vmem:[%s240 + $0x118] sm:$0xff]
        %v327 = vld [vmem:[%s240 + $0x120] sm:$0xff]
        %v328 = vld [vmem:[%s240 + $0x128] sm:$0xff]
        %v329 = vld [vmem:[%s240 + $0x130] sm:$0xff]
        %v330 = vld [vmem:[%s240 + $0x138] sm:$0xff]
        %v331 = vld [vmem:[%s240 + $0x140] sm:$0xff]
        %v332 = vld [vmem:[%s240 + $0x148] sm:$0xff]
        %v333 = vld [vmem:[%s240 + $0x150] sm:$0xff]
        %v334 = vld [vmem:[%s240 + $0x158] sm:$0xff]
        %v335 = vld [vmem:[%s240 + $0x160] sm:$0xff]
        %v336 = vld [vmem:[%s240 + $0x168] sm:$0xff]
        %v337 = vld [vmem:[%s240 + $0x170] sm:$0xff]
        %v338 = vld [vmem:[%s240 + $0x178] sm:$0xff]
        %v339 = vld [vmem:[%s240 + $0x180] sm:$0xff]
        %v340 = vld [vmem:[%s240 + $0x188] sm:$0xff]
        %v341 = vld [vmem:[%s240 + $0x190] sm:$0xff]
        %v342 = vld [vmem:[%s240 + $0x198] sm:$0xff]
        %v343 = vld [vmem:[%s240 + $0x1a0] sm:$0xff]
        %v344 = vld [vmem:[%s240 + $0x1a8] sm:$0xff]
        %v345 = vld [vmem:[%s240 + $0x1b0] sm:$0xff]
        %v346 = vld [vmem:[%s240 + $0x1b8] sm:$0xff]
        %v347 = vld [vmem:[%s240 + $0x1c0] sm:$0xff]
        %v348 = vld [vmem:[%s240 + $0x1c8] sm:$0xff]
        %v349 = vld [vmem:[%s240 + $0x1d0] sm:$0xff]
        %v350 = vld [vmem:[%s240 + $0x1d8] sm:$0xff]
        %v351 = vld [vmem:[%s240 + $0x1e0] sm:$0xff]
        %v352 = vld [vmem:[%s240 + $0x1e8] sm:$0xff]
        %v353 = vld [vmem:[%s240 + $0x1f0] sm:$0xff]
        %v354 = vld [vmem:[%s240 + $0x1f8] sm:$0xff]
        %v355 = vld [vmem:[%s240 + $0x200] sm:$0xff]
        %v356 = vld [vmem:[%s240 + $0x208] sm:$0xff]
        %v357 = vld [vmem:[%s240 + $0x210] sm:$0xff]
        %v358 = vld [vmem:[%s240 + $0x218] sm:$0xff]
        %v359 = vld [vmem:[%s240 + $0x220] sm:$0xff]
        %v360 = vld [vmem:[%s240 + $0x228] sm:$0xff]
        %v361 = vld [vmem:[%s240 + $0x230] sm:$0xff]
        %v362 = vld [vmem:[%s240 + $0x238] sm:$0xff]
        %v363 = vld [vmem:[%s240 + $0x240] sm:$0xff]
        %v364 = vld [vmem:[%s240 + $0x248] sm:$0xff]
        %v365 = vld [vmem:[%s240 + $0x250] sm:$0xff]
        %v366 = vld [vmem:[%s240 + $0x258] sm:$0xff]
        %v367 = vld [vmem:[%s240 + $0x260] sm:$0xff]
        %v368 = vld [vmem:[%s240 + $0x268] sm:$0xff]
        %v369 = vld [vmem:[%s240 + $0x270] sm:$0xff]
        %v370 = vld [vmem:[%s240 + $0x278] sm:$0xff]
        %v371 = vld [vmem:[%s240 + $0x280] sm:$0xff]
        %v372 = vld [vmem:[%s240 + $0x288] sm:$0xff]
        %v373 = vld [vmem:[%s240 + $0x290] sm:$0xff]
        %v374 = vld [vmem:[%s240 + $0x298] sm:$0xff]
        %v375 = vld [vmem:[%s240 + $0x2a0] sm:$0xff]
        %v376 = vld [vmem:[%s240 + $0x2a8] sm:$0xff]
        %v377 = vld [vmem:[%s240 + $0x2b0] sm:$0xff]
        %v378 = vld [vmem:[%s240 + $0x2b8] sm:$0xff]
        %v379 = vld [vmem:[%s240 + $0x2c0] sm:$0xff]
        %v380 = vld [vmem:[%s240 + $0x2c8] sm:$0xff]
        %v381 = vld [vmem:[%s240 + $0x2d0] sm:$0xff]
        %v382 = vld [vmem:[%s240 + $0x2d8] sm:$0xff]
        %v383 = vld [vmem:[%s240 + $0x2e0] sm:$0xff]
        %v384 = vld [vmem:[%s240 + $0x2e8] sm:$0xff]
        %v385 = vld [vmem:[%s240 + $0x2f0] sm:$0xff]
        %v386 = vld [vmem:[%s240 + $0x2f8] sm:$0xff]
        %v387 = vld [vmem:[%s240 + $0x300] sm:$0xff]
        %v388 = vld [vmem:[%s240 + $0x308] sm:$0xff]
        %v389 = vld [vmem:[%s240 + $0x310] sm:$0xff]
        %v390 = vld [vmem:[%s240 + $0x318] sm:$0xff]
        %v391 = vld [vmem:[%s240 + $0x320] sm:$0xff]
        %v392 = vld [vmem:[%s240 + $0x328] sm:$0xff]
        %v393 = vld [vmem:[%s240 + $0x330] sm:$0xff]
        %v394 = vld [vmem:[%s240 + $0x338] sm:$0xff]
        %v395 = vld [vmem:[%s240 + $0x340] sm:$0xff]
        %v396 = vld [vmem:[%s240 + $0x348] sm:$0xff]
        %v397 = vld [vmem:[%s240 + $0x350] sm:$0xff]
        %v398 = vld [vmem:[%s240 + $0x358] sm:$0xff]
        %v399 = vld [vmem:[%s240 + $0x360] sm:$0xff]
        %v400 = vld [vmem:[%s240 + $0x368] sm:$0xff]
        %v401 = vld [vmem:[%s240 + $0x370] sm:$0xff]
        %v402 = vld [vmem:[%s240 + $0x378] sm:$0xff]
        %v403 = vld [vmem:[%s240 + $0x380] sm:$0xff]
        %v404 = vld [vmem:[%s240 + $0x388] sm:$0xff]
        %v405 = vld [vmem:[%s240 + $0x390] sm:$0xff]
        %v406 = vld [vmem:[%s240 + $0x398] sm:$0xff]
        %v407 = vld [vmem:[%s240 + $0x3a0] sm:$0xff]
        %v408 = vld [vmem:[%s240 + $0x3a8] sm:$0xff]
        %v409 = vld [vmem:[%s240 + $0x3b0] sm:$0xff]
        %v410 = vld [vmem:[%s240 + $0x3b8] sm:$0xff]
        %v411 = vld [vmem:[%s240 + $0x3c0] sm:$0xff]
        %v412 = vld [vmem:[%s240 + $0x3c8] sm:$0xff]
        %v413 = vld [vmem:[%s240 + $0x3d0] sm:$0xff]
        %v414 = vld [vmem:[%s240 + $0x3d8] sm:$0xff]
        %v415 = vld [vmem:[%s240 + $0x3e0] sm:$0xff]
        %v416 = vld [vmem:[%s240 + $0x3e8] sm:$0xff]
        %v417 = vld [vmem:[%s240 + $0x3f0] sm:$0xff]
        %v418 = vld [vmem:[%s240 + $0x3f8] sm:$0xff]
        %420 = vst [vmem:[#allocation1] ss:$9 sm:$0xff] %v290
        %v421 = vld [vmem:[#allocation1] sm:$0xff]
        %v422 = vld [vmem:[#allocation1 + $0x9] sm:$0xff]
        %v423 = vld [vmem:[#allocation1 + $0x12] sm:$0xff]
        %v424 = vld [vmem:[#allocation1 + $0x1b] sm:$0xff]
        %v557 = vunpack.c.l.b16 %v291
        %v558 = vunpack.c.h.b16 %v291
        %v559 = vunpack.c.l.b16 %v292
        %v560 = vunpack.c.h.b16 %v292
        %v561 = vunpack.c.l.b16 %v293
        %v562 = vunpack.c.h.b16 %v293
        %v563 = vunpack.c.l.b16 %v294
        %v564 = vunpack.c.h.b16 %v294
        %v565 = vunpack.c.l.b16 %v295
        %v566 = vunpack.c.h.b16 %v295
        %v567 = vunpack.c.l.b16 %v296
        %v568 = vunpack.c.h.b16 %v296
        %v569 = vunpack.c.l.b16 %v297
        %v570 = vunpack.c.h.b16 %v297
        %v571 = vunpack.c.l.b16 %v298
        %v572 = vunpack.c.h.b16 %v298
        %v573 = vunpack.c.l.b16 %v299
        %v574 = vunpack.c.h.b16 %v299
        %v575 = vunpack.c.l.b16 %v300
        %v576 = vunpack.c.h.b16 %v300
        %v577 = vunpack.c.l.b16 %v301
        %v578 = vunpack.c.h.b16 %v301
        %v579 = vunpack.c.l.b16 %v302
        %v580 = vunpack.c.h.b16 %v302
        %v581 = vunpack.c.l.b16 %v303
        %v582 = vunpack.c.h.b16 %v303
        %v583 = vunpack.c.l.b16 %v304
        %v584 = vunpack.c.h.b16 %v304
        %v585 = vunpack.c.l.b16 %v305
        %v586 = vunpack.c.h.b16 %v305
        %v587 = vunpack.c.l.b16 %v306
        %v588 = vunpack.c.h.b16 %v306
        %v589 = vunpack.c.l.b16 %v307
        %v590 = vunpack.c.h.b16 %v307
        %v591 = vunpack.c.l.b16 %v308
        %v592 = vunpack.c.h.b16 %v308
        %v593 = vunpack.c.l.b16 %v309
        %v594 = vunpack.c.h.b16 %v309
        %v595 = vunpack.c.l.b16 %v310
        %v596 = vunpack.c.h.b16 %v310
        %v597 = vunpack.c.l.b16 %v311
        %v598 = vunpack.c.h.b16 %v311
        %v599 = vunpack.c.l.b16 %v312
        %v600 = vunpack.c.h.b16 %v312
        %v601 = vunpack.c.l.b16 %v313
        %v602 = vunpack.c.h.b16 %v313
        %v603 = vunpack.c.l.b16 %v314
        %v604 = vunpack.c.h.b16 %v314
        %v605 = vunpack.c.l.b16 %v315
        %v606 = vunpack.c.h.b16 %v315
        %v607 = vunpack.c.l.b16 %v316
        %v608 = vunpack.c.h.b16 %v316
        %v609 = vunpack.c.l.b16 %v317
        %v610 = vunpack.c.h.b16 %v317
        %v611 = vunpack.c.l.b16 %v318
        %v612 = vunpack.c.h.b16 %v318
        %v613 = vunpack.c.l.b16 %v319
        %v614 = vunpack.c.h.b16 %v319
        %v615 = vunpack.c.l.b16 %v320
        %v616 = vunpack.c.h.b16 %v320
        %v617 = vunpack.c.l.b16 %v321
        %v618 = vunpack.c.h.b16 %v321
        %v619 = vunpack.c.l.b16 %v322
        %v620 = vunpack.c.h.b16 %v322
        %v621 = vunpack.c.l.b16 %v323
        %v622 = vunpack.c.h.b16 %v323
        %v623 = vunpack.c.l.b16 %v324
        %v624 = vunpack.c.h.b16 %v324
        %v625 = vunpack.c.l.b16 %v325
        %v626 = vunpack.c.h.b16 %v325
        %v627 = vunpack.c.l.b16 %v326
        %v628 = vunpack.c.h.b16 %v326
        %v629 = vunpack.c.l.b16 %v327
        %v630 = vunpack.c.h.b16 %v327
        %v631 = vunpack.c.l.b16 %v328
        %v632 = vunpack.c.h.b16 %v328
        %v633 = vunpack.c.l.b16 %v329
        %v634 = vunpack.c.h.b16 %v329
        %v635 = vunpack.c.l.b16 %v330
        %v636 = vunpack.c.h.b16 %v330
        %v637 = vunpack.c.l.b16 %v331
        %v638 = vunpack.c.h.b16 %v331
        %v639 = vunpack.c.l.b16 %v332
        %v640 = vunpack.c.h.b16 %v332
        %v641 = vunpack.c.l.b16 %v333
        %v642 = vunpack.c.h.b16 %v333
        %v643 = vunpack.c.l.b16 %v334
        %v644 = vunpack.c.h.b16 %v334
        %v645 = vunpack.c.l.b16 %v335
        %v646 = vunpack.c.h.b16 %v335
        %v647 = vunpack.c.l.b16 %v336
        %v648 = vunpack.c.h.b16 %v336
        %v649 = vunpack.c.l.b16 %v337
        %v650 = vunpack.c.h.b16 %v337
        %v651 = vunpack.c.l.b16 %v338
        %v652 = vunpack.c.h.b16 %v338
        %v653 = vunpack.c.l.b16 %v339
        %v654 = vunpack.c.h.b16 %v339
        %v655 = vunpack.c.l.b16 %v340
        %v656 = vunpack.c.h.b16 %v340
        %v657 = vunpack.c.l.b16 %v341
        %v658 = vunpack.c.h.b16 %v341
        %v659 = vunpack.c.l.b16 %v342
        %v660 = vunpack.c.h.b16 %v342
        %v661 = vunpack.c.l.b16 %v343
        %v662 = vunpack.c.h.b16 %v343
        %v663 = vunpack.c.l.b16 %v344
        %v664 = vunpack.c.h.b16 %v344
        %v665 = vunpack.c.l.b16 %v345
        %v666 = vunpack.c.h.b16 %v345
        %v667 = vunpack.c.l.b16 %v346
        %v668 = vunpack.c.h.b16 %v346
        %v669 = vunpack.c.l.b16 %v347
        %v670 = vunpack.c.h.b16 %v347
        %v671 = vunpack.c.l.b16 %v348
        %v672 = vunpack.c.h.b16 %v348
        %v673 = vunpack.c.l.b16 %v349
        %v674 = vunpack.c.h.b16 %v349
        %v675 = vunpack.c.l.b16 %v350
        %v676 = vunpack.c.h.b16 %v350
        %v677 = vunpack.c.l.b16 %v351
        %v678 = vunpack.c.h.b16 %v351
        %v679 = vunpack.c.l.b16 %v352
        %v680 = vunpack.c.h.b16 %v352
        %v681 = vunpack.c.l.b16 %v353
        %v682 = vunpack.c.h.b16 %v353
        %v683 = vunpack.c.l.b16 %v354
        %v684 = vunpack.c.h.b16 %v354
        %v685 = vunpack.c.l.b16 %v355
        %v686 = vunpack.c.h.b16 %v355
        %v687 = vunpack.c.l.b16 %v356
        %v688 = vunpack.c.h.b16 %v356
        %v689 = vunpack.c.l.b16 %v357
        %v690 = vunpack.c.h.b16 %v357
        %v691 = vunpack.c.l.b16 %v358
        %v692 = vunpack.c.h.b16 %v358
        %v693 = vunpack.c.l.b16 %v359
        %v694 = vunpack.c.h.b16 %v359
        %v695 = vunpack.c.l.b16 %v360
        %v696 = vunpack.c.h.b16 %v360
        %v697 = vunpack.c.l.b16 %v361
        %v698 = vunpack.c.h.b16 %v361
        %v699 = vunpack.c.l.b16 %v362
        %v700 = vunpack.c.h.b16 %v362
        %v701 = vunpack.c.l.b16 %v363
        %v702 = vunpack.c.h.b16 %v363
        %v703 = vunpack.c.l.b16 %v364
        %v704 = vunpack.c.h.b16 %v364
        %v705 = vunpack.c.l.b16 %v365
        %v706 = vunpack.c.h.b16 %v365
        %v707 = vunpack.c.l.b16 %v366
        %v708 = vunpack.c.h.b16 %v366
        %v709 = vunpack.c.l.b16 %v367
        %v710 = vunpack.c.h.b16 %v367
        %v711 = vunpack.c.l.b16 %v368
        %v712 = vunpack.c.h.b16 %v368
        %v713 = vunpack.c.l.b16 %v369
        %v714 = vunpack.c.h.b16 %v369
        %v715 = vunpack.c.l.b16 %v370
        %v716 = vunpack.c.h.b16 %v370
        %v717 = vunpack.c.l.b16 %v371
        %v718 = vunpack.c.h.b16 %v371
        %v719 = vunpack.c.l.b16 %v372
        %v720 = vunpack.c.h.b16 %v372
        %v721 = vunpack.c.l.b16 %v373
        %v722 = vunpack.c.h.b16 %v373
        %v723 = vunpack.c.l.b16 %v374
        %v724 = vunpack.c.h.b16 %v374
        %v725 = vunpack.c.l.b16 %v375
        %v726 = vunpack.c.h.b16 %v375
        %v727 = vunpack.c.l.b16 %v376
        %v728 = vunpack.c.h.b16 %v376
        %v729 = vunpack.c.l.b16 %v377
        %v730 = vunpack.c.h.b16 %v377
        %v731 = vunpack.c.l.b16 %v378
        %v732 = vunpack.c.h.b16 %v378
        %v733 = vunpack.c.l.b16 %v379
        %v734 = vunpack.c.h.b16 %v379
        %v735 = vunpack.c.l.b16 %v380
        %v736 = vunpack.c.h.b16 %v380
        %v737 = vunpack.c.l.b16 %v381
        %v738 = vunpack.c.h.b16 %v381
        %v739 = vunpack.c.l.b16 %v382
        %v740 = vunpack.c.h.b16 %v382
        %v741 = vunpack.c.l.b16 %v383
        %v742 = vunpack.c.h.b16 %v383
        %v743 = vunpack.c.l.b16 %v384
        %v744 = vunpack.c.h.b16 %v384
        %v745 = vunpack.c.l.b16 %v385
        %v746 = vunpack.c.h.b16 %v385
        %v747 = vunpack.c.l.b16 %v386
        %v748 = vunpack.c.h.b16 %v386
        %v749 = vunpack.c.l.b16 %v387
        %v750 = vunpack.c.h.b16 %v387
        %v751 = vunpack.c.l.b16 %v388
        %v752 = vunpack.c.h.b16 %v388
        %v753 = vunpack.c.l.b16 %v389
        %v754 = vunpack.c.h.b16 %v389
        %v755 = vunpack.c.l.b16 %v390
        %v756 = vunpack.c.h.b16 %v390
        %v757 = vunpack.c.l.b16 %v391
        %v758 = vunpack.c.h.b16 %v391
        %v759 = vunpack.c.l.b16 %v392
        %v760 = vunpack.c.h.b16 %v392
        %v761 = vunpack.c.l.b16 %v393
        %v762 = vunpack.c.h.b16 %v393
        %v763 = vunpack.c.l.b16 %v394
        %v764 = vunpack.c.h.b16 %v394
        %v765 = vunpack.c.l.b16 %v395
        %v766 = vunpack.c.h.b16 %v395
        %v767 = vunpack.c.l.b16 %v396
        %v768 = vunpack.c.h.b16 %v396
        %v769 = vunpack.c.l.b16 %v397
        %v770 = vunpack.c.h.b16 %v397
        %v771 = vunpack.c.l.b16 %v398
        %v772 = vunpack.c.h.b16 %v398
        %v773 = vunpack.c.l.b16 %v399
        %v774 = vunpack.c.h.b16 %v399
        %v775 = vunpack.c.l.b16 %v400
        %v776 = vunpack.c.h.b16 %v400
        %v777 = vunpack.c.l.b16 %v401
        %v778 = vunpack.c.h.b16 %v401
        %v779 = vunpack.c.l.b16 %v402
        %v780 = vunpack.c.h.b16 %v402
        %v781 = vunpack.c.l.b16 %v403
        %v782 = vunpack.c.h.b16 %v403
        %v783 = vunpack.c.l.b16 %v404
        %v784 = vunpack.c.h.b16 %v404
        %v785 = vunpack.c.l.b16 %v405
        %v786 = vunpack.c.h.b16 %v405
        %v787 = vunpack.c.l.b16 %v406
        %v788 = vunpack.c.h.b16 %v406
        %v789 = vunpack.c.l.b16 %v407
        %v790 = vunpack.c.h.b16 %v407
        %v791 = vunpack.c.l.b16 %v408
        %v792 = vunpack.c.h.b16 %v408
        %v793 = vunpack.c.l.b16 %v409
        %v794 = vunpack.c.h.b16 %v409
        %v795 = vunpack.c.l.b16 %v410
        %v796 = vunpack.c.h.b16 %v410
        %v797 = vunpack.c.l.b16 %v411
        %v798 = vunpack.c.h.b16 %v411
        %v799 = vunpack.c.l.b16 %v412
        %v800 = vunpack.c.h.b16 %v412
        %v801 = vunpack.c.l.b16 %v413
        %v802 = vunpack.c.h.b16 %v413
        %v803 = vunpack.c.l.b16 %v414
        %v804 = vunpack.c.h.b16 %v414
        %v805 = vunpack.c.l.b16 %v415
        %v806 = vunpack.c.h.b16 %v415
        %v807 = vunpack.c.l.b16 %v416
        %v808 = vunpack.c.h.b16 %v416
        %v809 = vunpack.c.l.b16 %v417
        %v810 = vunpack.c.h.b16 %v417
        %v811 = vunpack.c.l.b16 %v418
        %v812 = vunpack.c.h.b16 %v418
        %v813 = vpack.c.b16 %v561, %v557
        %v814 = vpack.c.b16 %v562, %v558
        %v815 = vpack.c.b16 %v563, %v559
        %v816 = vpack.c.b16 %v564, %v560
        %v817 = vpack.c.b16 %v569, %v565
        %v818 = vpack.c.b16 %v570, %v566
        %v819 = vpack.c.b16 %v571, %v567
        %v820 = vpack.c.b16 %v572, %v568
        %v821 = vpack.c.b16 %v577, %v573
        %v822 = vpack.c.b16 %v578, %v574
        %v823 = vpack.c.b16 %v579, %v575
        %v824 = vpack.c.b16 %v580, %v576
        %v825 = vpack.c.b16 %v585, %v581
        %v826 = vpack.c.b16 %v586, %v582
        %v827 = vpack.c.b16 %v587, %v583
        %v828 = vpack.c.b16 %v588, %v584
        %v829 = vpack.c.b16 %v593, %v589
        %v830 = vpack.c.b16 %v594, %v590
        %v831 = vpack.c.b16 %v595, %v591
        %v832 = vpack.c.b16 %v596, %v592
        %v833 = vpack.c.b16 %v601, %v597
        %v834 = vpack.c.b16 %v602, %v598
        %v835 = vpack.c.b16 %v603, %v599
        %v836 = vpack.c.b16 %v604, %v600
        %v837 = vpack.c.b16 %v609, %v605
        %v838 = vpack.c.b16 %v610, %v606
        %v839 = vpack.c.b16 %v611, %v607
        %v840 = vpack.c.b16 %v612, %v608
        %v841 = vpack.c.b16 %v617, %v613
        %v842 = vpack.c.b16 %v618, %v614
        %v843 = vpack.c.b16 %v619, %v615
        %v844 = vpack.c.b16 %v620, %v616
        %v845 = vpack.c.b16 %v625, %v621
        %v846 = vpack.c.b16 %v626, %v622
        %v847 = vpack.c.b16 %v627, %v623
        %v848 = vpack.c.b16 %v628, %v624
        %v849 = vpack.c.b16 %v633, %v629
        %v850 = vpack.c.b16 %v634, %v630
        %v851 = vpack.c.b16 %v635, %v631
        %v852 = vpack.c.b16 %v636, %v632
        %v853 = vpack.c.b16 %v641, %v637
        %v854 = vpack.c.b16 %v642, %v638
        %v855 = vpack.c.b16 %v643, %v639
        %v856 = vpack.c.b16 %v644, %v640
        %v857 = vpack.c.b16 %v649, %v645
        %v858 = vpack.c.b16 %v650, %v646
        %v859 = vpack.c.b16 %v651, %v647
        %v860 = vpack.c.b16 %v652, %v648
        %v861 = vpack.c.b16 %v657, %v653
        %v862 = vpack.c.b16 %v658, %v654
        %v863 = vpack.c.b16 %v659, %v655
        %v864 = vpack.c.b16 %v660, %v656
        %v865 = vpack.c.b16 %v665, %v661
        %v866 = vpack.c.b16 %v666, %v662
        %v867 = vpack.c.b16 %v667, %v663
        %v868 = vpack.c.b16 %v668, %v664
        %v869 = vpack.c.b16 %v673, %v669
        %v870 = vpack.c.b16 %v674, %v670
        %v871 = vpack.c.b16 %v675, %v671
        %v872 = vpack.c.b16 %v676, %v672
        %v873 = vpack.c.b16 %v681, %v677
        %v874 = vpack.c.b16 %v682, %v678
        %v875 = vpack.c.b16 %v683, %v679
        %v876 = vpack.c.b16 %v684, %v680
        %v877 = vpack.c.b16 %v689, %v685
        %v878 = vpack.c.b16 %v690, %v686
        %v879 = vpack.c.b16 %v691, %v687
        %v880 = vpack.c.b16 %v692, %v688
        %v881 = vpack.c.b16 %v697, %v693
        %v882 = vpack.c.b16 %v698, %v694
        %v883 = vpack.c.b16 %v699, %v695
        %v884 = vpack.c.b16 %v700, %v696
        %v885 = vpack.c.b16 %v705, %v701
        %v886 = vpack.c.b16 %v706, %v702
        %v887 = vpack.c.b16 %v707, %v703
        %v888 = vpack.c.b16 %v708, %v704
        %v889 = vpack.c.b16 %v713, %v709
        %v890 = vpack.c.b16 %v714, %v710
        %v891 = vpack.c.b16 %v715, %v711
        %v892 = vpack.c.b16 %v716, %v712
        %v893 = vpack.c.b16 %v721, %v717
        %v894 = vpack.c.b16 %v722, %v718
        %v895 = vpack.c.b16 %v723, %v719
        %v896 = vpack.c.b16 %v724, %v720
        %v897 = vpack.c.b16 %v729, %v725
        %v898 = vpack.c.b16 %v730, %v726
        %v899 = vpack.c.b16 %v731, %v727
        %v900 = vpack.c.b16 %v732, %v728
        %v901 = vpack.c.b16 %v737, %v733
        %v902 = vpack.c.b16 %v738, %v734
        %v903 = vpack.c.b16 %v739, %v735
        %v904 = vpack.c.b16 %v740, %v736
        %v905 = vpack.c.b16 %v745, %v741
        %v906 = vpack.c.b16 %v746, %v742
        %v907 = vpack.c.b16 %v747, %v743
        %v908 = vpack.c.b16 %v748, %v744
        %v909 = vpack.c.b16 %v753, %v749
        %v910 = vpack.c.b16 %v754, %v750
        %v911 = vpack.c.b16 %v755, %v751
        %v912 = vpack.c.b16 %v756, %v752
        %v913 = vpack.c.b16 %v761, %v757
        %v914 = vpack.c.b16 %v762, %v758
        %v915 = vpack.c.b16 %v763, %v759
        %v916 = vpack.c.b16 %v764, %v760
        %v917 = vpack.c.b16 %v769, %v765
        %v918 = vpack.c.b16 %v770, %v766
        %v919 = vpack.c.b16 %v771, %v767
        %v920 = vpack.c.b16 %v772, %v768
        %v921 = vpack.c.b16 %v777, %v773
        %v922 = vpack.c.b16 %v778, %v774
        %v923 = vpack.c.b16 %v779, %v775
        %v924 = vpack.c.b16 %v780, %v776
        %v925 = vpack.c.b16 %v785, %v781
        %v926 = vpack.c.b16 %v786, %v782
        %v927 = vpack.c.b16 %v787, %v783
        %v928 = vpack.c.b16 %v788, %v784
        %v929 = vpack.c.b16 %v793, %v789
        %v930 = vpack.c.b16 %v794, %v790
        %v931 = vpack.c.b16 %v795, %v791
        %v932 = vpack.c.b16 %v796, %v792
        %v933 = vpack.c.b16 %v801, %v797
        %v934 = vpack.c.b16 %v802, %v798
        %v935 = vpack.c.b16 %v803, %v799
        %v936 = vpack.c.b16 %v804, %v800
        %v937 = vpack.c.b16 %v809, %v805
        %v938 = vpack.c.b16 %v810, %v806
        %v939 = vpack.c.b16 %v811, %v807
        %v940 = vpack.c.b16 %v812, %v808
        %1069 = vmatpush.bf16.msra.mxu0 %v841
        %1070 = vmatpush.bf16.msra.mxu0 %v837
        %1071 = vmatpush.bf16.msra.mxu0 %v833
        %1072 = vmatpush.bf16.msra.mxu0 %v829
        %1073 = vmatpush.bf16.msra.mxu0 %v825
        %1074 = vmatpush.bf16.msra.mxu0 %v821
        %1075 = vmatpush.bf16.msra.mxu0 %v817
        %1076 = vmatpush.bf16.msra.mxu0 %v813
        %1077 = vmatmul.bf16.gmra.mxu0 %v421
        %v1078 = vpop.f32.mrf.mxu0
        %v1079 = vadd.f32 0.0, %v1078
        %v1080 = vpop.f32.mrf.mxu0
        %1081 = vdwg.mxu0
        %1082 = vmatpush.bf16.msra.mxu0 %v873
        %1083 = vmatpush.bf16.msra.mxu0 %v869
        %1084 = vmatpush.bf16.msra.mxu0 %v865
        %1085 = vmatpush.bf16.msra.mxu0 %v861
        %1086 = vmatpush.bf16.msra.mxu0 %v857
        %1087 = vmatpush.bf16.msra.mxu0 %v853
        %1088 = vmatpush.bf16.msra.mxu0 %v849
        %1089 = vmatpush.bf16.msra.mxu0 %v845
        %1090 = vmatmul.bf16.gmra.mxu0 %v422
        %v1091 = vpop.f32.mrf.mxu0
        %v1092 = vadd.f32 %v1079, %v1091
        %v1093 = vpop.f32.mrf.mxu0
        %1094 = vdwg.mxu0
        %1095 = vmatpush.bf16.msra.mxu0 %v905
        %1096 = vmatpush.bf16.msra.mxu0 %v901
        %1097 = vmatpush.bf16.msra.mxu0 %v897
        %1098 = vmatpush.bf16.msra.mxu0 %v893
        %1099 = vmatpush.bf16.msra.mxu0 %v889
        %1100 = vmatpush.bf16.msra.mxu0 %v885
        %1101 = vmatpush.bf16.msra.mxu0 %v881
        %1102 = vmatpush.bf16.msra.mxu0 %v877
        %1103 = vmatmul.bf16.gmra.mxu0 %v423
        %v1104 = vpop.f32.mrf.mxu0
        %v1105 = vadd.f32 %v1092, %v1104
        %v1106 = vpop.f32.mrf.mxu0
        %1107 = vdwg.mxu0
        %1108 = vmatpush.bf16.msra.mxu0 %v937
        %1109 = vmatpush.bf16.msra.mxu0 %v933
        %1110 = vmatpush.bf16.msra.mxu0 %v929
        %1111 = vmatpush.bf16.msra.mxu0 %v925
        %1112 = vmatpush.bf16.msra.mxu0 %v921
        %1113 = vmatpush.bf16.msra.mxu0 %v917
        %1114 = vmatpush.bf16.msra.mxu0 %v913
        %1115 = vmatpush.bf16.msra.mxu0 %v909
        %1116 = vmatmul.bf16.gmra.mxu0 %v424
        %v1117 = vpop.f32.mrf.mxu0
        %v1118 = vadd.f32 %v1105, %v1117
        %v1119 = vpop.f32.mrf.mxu0
        %1120 = vdwg.mxu0
        %1121 = vmatpush.bf16.msra.mxu0 %v842
        %1122 = vmatpush.bf16.msra.mxu0 %v838
        %1123 = vmatpush.bf16.msra.mxu0 %v834
        %1124 = vmatpush.bf16.msra.mxu0 %v830
        %1125 = vmatpush.bf16.msra.mxu0 %v826
        %1126 = vmatpush.bf16.msra.mxu0 %v822
        %1127 = vmatpush.bf16.msra.mxu0 %v818
        %1128 = vmatpush.bf16.msra.mxu0 %v814
        %1129 = vmatmul.bf16.gmra.mxu0 %v421
        %v1130 = vpop.f32.mrf.mxu0
        %v1131 = vadd.f32 0.0, %v1130
        %v1132 = vpop.f32.mrf.mxu0
        %1133 = vdwg.mxu0
        %1134 = vmatpush.bf16.msra.mxu0 %v874
        %1135 = vmatpush.bf16.msra.mxu0 %v870
        %1136 = vmatpush.bf16.msra.mxu0 %v866
        %1137 = vmatpush.bf16.msra.mxu0 %v862
        %1138 = vmatpush.bf16.msra.mxu0 %v858
        %1139 = vmatpush.bf16.msra.mxu0 %v854
        %1140 = vmatpush.bf16.msra.mxu0 %v850
        %1141 = vmatpush.bf16.msra.mxu0 %v846
        %1142 = vmatmul.bf16.gmra.mxu0 %v422
        %v1143 = vpop.f32.mrf.mxu0
        %v1144 = vadd.f32 %v1131, %v1143
        %v1145 = vpop.f32.mrf.mxu0
        %1146 = vdwg.mxu0
        %1147 = vmatpush.bf16.msra.mxu0 %v906
        %1148 = vmatpush.bf16.msra.mxu0 %v902
        %1149 = vmatpush.bf16.msra.mxu0 %v898
        %1150 = vmatpush.bf16.msra.mxu0 %v894
        %1151 = vmatpush.bf16.msra.mxu0 %v890
        %1152 = vmatpush.bf16.msra.mxu0 %v886
        %1153 = vmatpush.bf16.msra.mxu0 %v882
        %1154 = vmatpush.bf16.msra.mxu0 %v878
        %1155 = vmatmul.bf16.gmra.mxu0 %v423
        %v1156 = vpop.f32.mrf.mxu0
        %v1157 = vadd.f32 %v1144, %v1156
        %v1158 = vpop.f32.mrf.mxu0
        %1159 = vdwg.mxu0
        %1160 = vmatpush.bf16.msra.mxu0 %v938
        %1161 = vmatpush.bf16.msra.mxu0 %v934
        %1162 = vmatpush.bf16.msra.mxu0 %v930
        %1163 = vmatpush.bf16.msra.mxu0 %v926
        %1164 = vmatpush.bf16.msra.mxu0 %v922
        %1165 = vmatpush.bf16.msra.mxu0 %v918
        %1166 = vmatpush.bf16.msra.mxu0 %v914
        %1167 = vmatpush.bf16.msra.mxu0 %v910
        %1168 = vmatmul.bf16.gmra.mxu0 %v424
        %v1169 = vpop.f32.mrf.mxu0
        %v1170 = vadd.f32 %v1157, %v1169
        %v1171 = vpop.f32.mrf.mxu0
        %1172 = vdwg.mxu0
        %1173 = vmatpush.bf16.msra.mxu0 %v843
        %1174 = vmatpush.bf16.msra.mxu0 %v839
        %1175 = vmatpush.bf16.msra.mxu0 %v835
        %1176 = vmatpush.bf16.msra.mxu0 %v831
        %1177 = vmatpush.bf16.msra.mxu0 %v827
        %1178 = vmatpush.bf16.msra.mxu0 %v823
        %1179 = vmatpush.bf16.msra.mxu0 %v819
        %1180 = vmatpush.bf16.msra.mxu0 %v815
        %1181 = vmatmul.bf16.gmra.mxu0 %v421
        %v1182 = vpop.f32.mrf.mxu0
        %v1183 = vadd.f32 0.0, %v1182
        %v1184 = vpop.f32.mrf.mxu0
        %1185 = vdwg.mxu0
        %1186 = vmatpush.bf16.msra.mxu0 %v875
        %1187 = vmatpush.bf16.msra.mxu0 %v871
        %1188 = vmatpush.bf16.msra.mxu0 %v867
        %1189 = vmatpush.bf16.msra.mxu0 %v863
        %1190 = vmatpush.bf16.msra.mxu0 %v859
        %1191 = vmatpush.bf16.msra.mxu0 %v855
        %1192 = vmatpush.bf16.msra.mxu0 %v851
        %1193 = vmatpush.bf16.msra.mxu0 %v847
        %1194 = vmatmul.bf16.gmra.mxu0 %v422
        %v1195 = vpop.f32.mrf.mxu0
        %v1196 = vadd.f32 %v1183, %v1195
        %v1197 = vpop.f32.mrf.mxu0
        %1198 = vdwg.mxu0
        %1199 = vmatpush.bf16.msra.mxu0 %v907
        %1200 = vmatpush.bf16.msra.mxu0 %v903
        %1201 = vmatpush.bf16.msra.mxu0 %v899
        %1202 = vmatpush.bf16.msra.mxu0 %v895
        %1203 = vmatpush.bf16.msra.mxu0 %v891
        %1204 = vmatpush.bf16.msra.mxu0 %v887
        %1205 = vmatpush.bf16.msra.mxu0 %v883
        %1206 = vmatpush.bf16.msra.mxu0 %v879
        %1207 = vmatmul.bf16.gmra.mxu0 %v423
        %v1208 = vpop.f32.mrf.mxu0
        %v1209 = vadd.f32 %v1196, %v1208
        %v1210 = vpop.f32.mrf.mxu0
        %1211 = vdwg.mxu0
        %1212 = vmatpush.bf16.msra.mxu0 %v939
        %1213 = vmatpush.bf16.msra.mxu0 %v935
        %1214 = vmatpush.bf16.msra.mxu0 %v931
        %1215 = vmatpush.bf16.msra.mxu0 %v927
        %1216 = vmatpush.bf16.msra.mxu0 %v923
        %1217 = vmatpush.bf16.msra.mxu0 %v919
        %1218 = vmatpush.bf16.msra.mxu0 %v915
        %1219 = vmatpush.bf16.msra.mxu0 %v911
        %1220 = vmatmul.bf16.gmra.mxu0 %v424
        %v1221 = vpop.f32.mrf.mxu0
        %v1222 = vadd.f32 %v1209, %v1221
        %v1223 = vpop.f32.mrf.mxu0
        %1224 = vdwg.mxu0
        %1225 = vmatpush.bf16.msra.mxu0 %v844
        %1226 = vmatpush.bf16.msra.mxu0 %v840
        %1227 = vmatpush.bf16.msra.mxu0 %v836
        %1228 = vmatpush.bf16.msra.mxu0 %v832
        %1229 = vmatpush.bf16.msra.mxu0 %v828
        %1230 = vmatpush.bf16.msra.mxu0 %v824
        %1231 = vmatpush.bf16.msra.mxu0 %v820
        %1232 = vmatpush.bf16.msra.mxu0 %v816
        %1233 = vmatmul.bf16.gmra.mxu0 %v421
        %v1234 = vpop.f32.mrf.mxu0
        %v1235 = vadd.f32 0.0, %v1234
        %v1236 = vpop.f32.mrf.mxu0
        %1237 = vdwg.mxu0
        %1238 = vmatpush.bf16.msra.mxu0 %v876
        %1239 = vmatpush.bf16.msra.mxu0 %v872
        %1240 = vmatpush.bf16.msra.mxu0 %v868
        %1241 = vmatpush.bf16.msra.mxu0 %v864
        %1242 = vmatpush.bf16.msra.mxu0 %v860
        %1243 = vmatpush.bf16.msra.mxu0 %v856
        %1244 = vmatpush.bf16.msra.mxu0 %v852
        %1245 = vmatpush.bf16.msra.mxu0 %v848
        %1246 = vmatmul.bf16.gmra.mxu0 %v422
        %v1247 = vpop.f32.mrf.mxu0
        %v1248 = vadd.f32 %v1235, %v1247
        %v1249 = vpop.f32.mrf.mxu0
        %1250 = vdwg.mxu0
        %1251 = vmatpush.bf16.msra.mxu0 %v908
        %1252 = vmatpush.bf16.msra.mxu0 %v904
        %1253 = vmatpush.bf16.msra.mxu0 %v900
        %1254 = vmatpush.bf16.msra.mxu0 %v896
        %1255 = vmatpush.bf16.msra.mxu0 %v892
        %1256 = vmatpush.bf16.msra.mxu0 %v888
        %1257 = vmatpush.bf16.msra.mxu0 %v884
        %1258 = vmatpush.bf16.msra.mxu0 %v880
        %1259 = vmatmul.bf16.gmra.mxu0 %v423
        %v1260 = vpop.f32.mrf.mxu0
        %v1261 = vadd.f32 %v1248, %v1260
        %v1262 = vpop.f32.mrf.mxu0
        %1263 = vdwg.mxu0
        %1264 = vmatpush.bf16.msra.mxu0 %v940
        %1265 = vmatpush.bf16.msra.mxu0 %v936
        %1266 = vmatpush.bf16.msra.mxu0 %v932
        %1267 = vmatpush.bf16.msra.mxu0 %v928
        %1268 = vmatpush.bf16.msra.mxu0 %v924
        %1269 = vmatpush.bf16.msra.mxu0 %v920
        %1270 = vmatpush.bf16.msra.mxu0 %v916
        %1271 = vmatpush.bf16.msra.mxu0 %v912
        %1272 = vmatmul.bf16.gmra.mxu0 %v424
        %v1273 = vpop.f32.mrf.mxu0
        %v1274 = vadd.f32 %v1261, %v1273
        %v1275 = vpop.f32.mrf.mxu0
        %1276 = vdwg.mxu0
        %v1281 = vrot.slane %v1170, 6
        %v1282 = vrot.slane %v1222, 4
        %v1283 = vrot.slane %v1274, 2
        %vm1284 = vcmask 1041408
        %v1285 = vsel %vm1284, %v1118, %v1281
        %vm1286 = vcmask 1045508
        %v1287 = vsel %vm1286, %v1282, %v1283
        %vm1288 = vcmask 1043456
        %v1289 = vsel %vm1288, %v1285, %v1287
        %v1291 = vadd.f32 %v289, %v1289
        %1292 = vst [vmem:[#allocation2] sm:$0xff] %v1291
        // Predicated region
        $region49: #{tpu_custom_call.1} parent=31 // pred_check
          %p1293 = pneg %p284
        $region50: #{tpu_custom_call.1} parent=31 // pred_check_branch
          %1295 = sbr.rel (%p1293) target = $region52
        $region51: #{tpu_custom_call.1} parent=31 // pred_region
          %v1296 = vld [vmem:[#allocation2] sm:$0xff]
          %v1297 = vld [vmem:[%s250] sm:$0xf]
          %v1299 = vperm.slane %v1297, 0
          %v1300 = vperm.slane %v1297, 1
          %v1301 = vperm.slane %v1297, 2
          %v1302 = vperm.slane %v1297, 3
          %v1303 = vrot.slane %v1300, 6
          %v1304 = vrot.slane %v1301, 4
          %v1305 = vrot.slane %v1302, 2
          %v1306 = vsel %vm1284, %v1299, %v1303
          %v1307 = vsel %vm1286, %v1304, %v1305
          %v1308 = vsel %vm1288, %v1306, %v1307
          %v1310 = vadd.f32 %v1296, %v1308
          %v1311 = vmax.f32 %v1310, 0.0
          %1312 = vst [vmem:[%s278] sm:$0xff] %v1311
        $region52: #{tpu_custom_call.1} parent=31 // pred_fallthru
          _
        %s1313 = sand.u32 %s132, 1
        %s1314 = scalar_lea.sflag [#allocation5], %s1313
        %s1315 = sand.u32 %s132, 1
        %s1316 = smul.addr %s1315, 8
        %s1317 = scalar_lea.vmem [#allocation9], %s1316
        // Predicated region
        $region53: #{tpu_custom_call.1} parent=31 // pred_check
          %p1318 = pneg %p142
        $region54: #{tpu_custom_call.1} parent=31 // pred_check_branch
          %1320 = sbr.rel (%p1318) target = $region56
        $region55: #{tpu_custom_call.1} parent=31 // pred_region
          %s1321 = smul.u32 4, %s27
          %1323 = vsyncadd %s1314, 0
          %s1324 = smul.addr %s26, 8
          %s1325 = sadd.s32 %s1321, %s1324
          %s1326 = smul.addr %s1325, 2
          %s1327 = scalar_lea.hbm %s3, %s1326
          %s1329 = sshll.u32 %s1317, 4
          %s1330 = int_to_ptr.vmem [resolvable:$true] %s1329
          %s1331 = sshll.u32 %s1327, 4
          %s1332 = int_to_ptr.hbm [resolvable:$true] %s1331
          %1334 = dma.vmem_to_hbm [thread:$0]  %s1330, 128, %s1332, %s1314
        $region56: #{tpu_custom_call.1} parent=31 // pred_fallthru
          _
      $region32: #{tpu_custom_call.1} parent=5 // pred_fallthru
        _
      %p1335 = scmp.le.s32.totalorder 2, %s16
      // Predicated region
      $region57: #{tpu_custom_call.1} parent=5 // pred_check
        %p1336 = pneg %p1335
      $region58: #{tpu_custom_call.1} parent=5 // pred_check_branch
        %1338 = sbr.rel (%p1336) target = $region60
      $region59: #{tpu_custom_call.1} parent=5 // pred_region
        %s1339 = ssub.s32 %s16, 2
        // Predicated region
        $region61: #{tpu_custom_call.1} parent=59 // pred_check
          %p1340 = pneg %p148
        $region62: #{tpu_custom_call.1} parent=59 // pred_check_branch
          %1342 = sbr.rel (%p1340) target = $region64
        $region63: #{tpu_custom_call.1} parent=59 // pred_region
          %s1343 = sand.u32 %s133, 1
          %s1344 = scalar_lea.sflag [#allocation5], %s1343
          %s1345 = sand.u32 %s133, 1
          %s1346 = smul.addr %s1345, 8
          %s1347 = scalar_lea.vmem [#allocation9], %s1346
          %1349 = dma.done %s1344, 128
        $region64: #{tpu_custom_call.1} parent=59 // pred_fallthru
          _
      $region60: #{tpu_custom_call.1} parent=5 // pred_fallthru
        _
    $region6: #{tpu_custom_call.1} parent=1 // loop_footer
      %s20 = sadd.s32 1, %s16
    $region7: #{tpu_custom_call.1} parent=1 // loop_footer_branch
      %15 = sbr.rel target = $region3
    $region8: #{tpu_custom_call.1} parent=1 // loop_exit
      _
    %1350 = vsyncpa [#allocation4], 1
    %s1351 = scalar_lea.sflag [#allocation4], 1
    %1352 = vsyncpa %s1351, 1
    %1353 = vsyncpa [#allocation7], 1
    %s1354 = scalar_lea.sflag [#allocation7], 1
    %1355 = vsyncpa %s1354, 1
    %1356 = vsyncpa [#allocation5], 1
    %s1357 = scalar_lea.sflag [#allocation5], 1
    %1358 = vsyncpa %s1357, 1

</llo_original>
